<compile_context>
chip_gen: v5e
topology: v5e:2x2
jax: 0.10.0
libtpu: 0.0.40
codegen_flags: <defaults>
</compile_context>

<pallas_src>
import functools
import math

import numpy as np
import jax
import jax.numpy as jnp
from jax import lax
from jax.experimental import pallas as pl
from jax.experimental.pallas import tpu as pltpu

EPS = 1e-5
NEG = -1e30

# Tile targets (collapse to full dims at the toy test config). Re-derive per
# generation if pushing larger: these fit well under v7x's 64 MiB VMEM.
TS_MM = 1024        # sequence tile for the big matmuls
TN_MM = 1024        # output-feature tile
TK_MM = 512         # reduction tile
TS_LN = 256         # sequence tile for LayerNorm (full-H rows resident)
TSQ_ATTN = 512      # query tile for attention
VMEM_LIMIT_BYTES = 48 * 1024 * 1024   # <= v7x physical 64 MiB, > default 16/32


# ----------------------------------------------------------------------------
# in-kernel helpers
# ----------------------------------------------------------------------------
def _layernorm(x, g, b):
    xf = x.astype(jnp.float32)
    mu = jnp.mean(xf, axis=-1, keepdims=True)
    var = jnp.mean((xf - mu) ** 2, axis=-1, keepdims=True)
    return (xf - mu) * lax.rsqrt(var + EPS) * g + b


def _gelu_new(x):
    # GPT-J "gelu_new" (tanh approximation)
    c = 0.7978845608028654  # sqrt(2/pi)
    return 0.5 * x * (1.0 + jnp.tanh(c * (x + 0.044715 * x * x * x)))


def _tile(dim, target):
    t = min(dim, target)
    assert dim % t == 0, f"dim {dim} not divisible by tile {t}"
    return t


# ----------------------------------------------------------------------------
# Pallas kernels
# ----------------------------------------------------------------------------
def ln_kernel(x_ref, g_ref, b_ref, o_ref):
    """grid (b, s): LayerNorm over full H rows -> bf16."""
    o_ref[...] = _layernorm(x_ref[...], g_ref[...], b_ref[...]).astype(o_ref.dtype)


def qkv_rotary_kernel(xn_ref, w_ref, cos_ref, sin_ref, q_ref, kv_ref, acc_ref, *, Dh):
    """grid (b, h, s, k): per-head fused QKV projection, K-tiled over H.
    Rotary (GPT-J rotate_every_two, realised on de-interleaved [even|odd]
    columns) is applied in f32 in the finalize step; q scaling (1/sqrt(Dh))
    is folded into Wq on the host."""
    kk = pl.program_id(3)
    half = Dh // 2

    @pl.when(kk == 0)
    def _():
        acc_ref[...] = jnp.zeros_like(acc_ref)

    acc_ref[...] += jnp.dot(xn_ref[...], w_ref[...],
                            preferred_element_type=jnp.float32)

    @pl.when(kk == pl.num_programs(3) - 1)
    def _():
        acc = acc_ref[...]                              # [TS, 3*Dh] f32
        c = cos_ref[...]                                # [TS, Dh//2]
        s = sin_ref[...]
        qe, qo = acc[:, :half], acc[:, half:Dh]
        ke, ko = acc[:, Dh:Dh + half], acc[:, Dh + half:2 * Dh]
        v = acc[:, 2 * Dh:]
        q_ref[...] = jnp.concatenate(
            [qe * c - qo * s, qo * c + qe * s], axis=-1).astype(q_ref.dtype)
        kv_ref[...] = jnp.concatenate(
            [ke * c - ko * s, ko * c + ke * s, v], axis=-1).astype(kv_ref.dtype)


def attn_kernel(q_ref, kv_ref, mask_ref, ctx_ref, *, Dh):
    """grid (b, h, q-tile): masked softmax(q k^T) @ v for one head / q-tile.
    Attention weights never leave VMEM; causal + padding bias built in-kernel."""
    TSQ = q_ref.shape[0]
    Skv = kv_ref.shape[0]
    sq = pl.program_id(2)

    q = q_ref[...]                                       # [TSQ, Dh] bf16
    kv = kv_ref[...]                                     # [S, 2*Dh] bf16
    k = kv[:, :Dh]
    v = kv[:, Dh:]

    # single K=Dh contraction per head (fills the 256-deep MXU at real sizes)
    s = lax.dot_general(q, k, (((1,), (1,)), ((), ())),
                        preferred_element_type=jnp.float32)   # [TSQ, S]

    rows = sq * TSQ + lax.broadcasted_iota(jnp.int32, (TSQ, Skv), 0)
    cols = lax.broadcasted_iota(jnp.int32, (TSQ, Skv), 1)
    bias = jnp.where(rows >= cols, 0.0, NEG) + (1.0 - mask_ref[...]) * NEG
    s = s + bias

    m = jnp.max(s, axis=-1, keepdims=True)
    e = jnp.exp(s - m)
    p = e * pl.reciprocal(jnp.sum(e, axis=-1, keepdims=True), approx=True)
    ctx_ref[...] = jnp.dot(p.astype(jnp.bfloat16), v,
                           preferred_element_type=jnp.float32).astype(ctx_ref.dtype)


def attn_out_kernel(x_ref, ctx_ref, wo_ref, o_ref, acc_ref):
    """grid (b, s, n, h): o = x + sum_h ctx_h @ Wo_h (uniform K=Dh steps)."""
    h = pl.program_id(3)

    @pl.when(h == 0)
    def _():
        acc_ref[...] = x_ref[...]

    acc_ref[...] += jnp.dot(ctx_ref[...], wo_ref[...],
                            preferred_element_type=jnp.float32)

    @pl.when(h == pl.num_programs(3) - 1)
    def _():
        o_ref[...] = acc_ref[...]


def mlp_in_kernel(xn_ref, win_ref, bin_ref, a_ref, acc_ref):
    """grid (b, s, n, k): a = gelu(xn @ Win + bin), K-tiled over H."""
    kk = pl.program_id(3)

    @pl.when(kk == 0)
    def _():
        acc_ref[...] = jnp.zeros_like(acc_ref)

    acc_ref[...] += jnp.dot(xn_ref[...], win_ref[...],
                            preferred_element_type=jnp.float32)

    @pl.when(kk == pl.num_programs(3) - 1)
    def _():
        a_ref[...] = _gelu_new(acc_ref[...] + bin_ref[...]).astype(a_ref.dtype)


def mlp_out_kernel(res_ref, a_ref, wout_ref, bout_ref, o_ref, acc_ref):
    """grid (b, s, n, k): o = res + a @ Wout + bout, K-tiled over M."""
    kk = pl.program_id(3)

    @pl.when(kk == 0)
    def _():
        acc_ref[...] = res_ref[...] + bout_ref[...]

    acc_ref[...] += jnp.dot(a_ref[...], wout_ref[...],
                            preferred_element_type=jnp.float32)

    @pl.when(kk == pl.num_programs(3) - 1)
    def _():
        o_ref[...] = acc_ref[...]


def lm_head_kernel(xn_ref, wlm_ref, blm_ref, o_ref, acc_ref):
    """grid (b, s, v, k): logits tile = xn @ Wlm + blm, K-tiled over H."""
    kk = pl.program_id(3)

    @pl.when(kk == 0)
    def _():
        acc_ref[...] = jnp.zeros_like(acc_ref)

    acc_ref[...] += jnp.dot(xn_ref[...], wlm_ref[...],
                            preferred_element_type=jnp.float32)

    @pl.when(kk == pl.num_programs(3) - 1)
    def _():
        o_ref[...] = acc_ref[...] + blm_ref[...]


# ----------------------------------------------------------------------------
# pallas_call wrappers
# ----------------------------------------------------------------------------
def _cparams(sem):
    return pltpu.CompilerParams(dimension_semantics=sem,
                                vmem_limit_bytes=VMEM_LIMIT_BYTES)


def layer_norm(x, g, b, cfg):
    B, S, H = cfg["B"], cfg["S"], cfg["H"]
    TS = _tile(S, TS_LN)
    return pl.pallas_call(
        ln_kernel,
        out_shape=jax.ShapeDtypeStruct((B, S, H), jnp.bfloat16),
        grid=(B, S // TS),
        in_specs=[
            pl.BlockSpec((None, TS, H), lambda b_, s_: (b_, s_, 0)),
            pl.BlockSpec((1, H), lambda b_, s_: (0, 0)),
            pl.BlockSpec((1, H), lambda b_, s_: (0, 0)),
        ],
        out_specs=pl.BlockSpec((None, TS, H), lambda b_, s_: (b_, s_, 0)),
        compiler_params=_cparams(("parallel", "parallel")),
    )(x, g, b)


def qkv_rotary(xn, wqkv, cos, sin, cfg):
    B, S, H, nH, Dh = cfg["B"], cfg["S"], cfg["H"], cfg["nH"], cfg["Dh"]
    half = Dh // 2
    TS, TK = _tile(S, TS_MM), _tile(H, TK_MM)
    kern = functools.partial(qkv_rotary_kernel, Dh=Dh)
    return pl.pallas_call(
        kern,
        out_shape=(jax.ShapeDtypeStruct((B, nH, S, Dh), jnp.bfloat16),       # rotated q
                   jax.ShapeDtypeStruct((B, nH, S, 2 * Dh), jnp.bfloat16)),  # [rotated k | v]
        grid=(B, nH, S // TS, H // TK),
        in_specs=[
            pl.BlockSpec((None, TS, TK), lambda b, h, s, k: (b, s, k)),       # ln1(x)
            pl.BlockSpec((None, TK, 3 * Dh), lambda b, h, s, k: (h, k, 0)),   # per-head Wqkv slab
            pl.BlockSpec((TS, half), lambda b, h, s, k: (s, 0)),              # cos [S, Dh//2]
            pl.BlockSpec((TS, half), lambda b, h, s, k: (s, 0)),              # sin [S, Dh//2]
        ],
        out_specs=(pl.BlockSpec((None, None, TS, Dh), lambda b, h, s, k: (b, h, s, 0)),
                   pl.BlockSpec((None, None, TS, 2 * Dh), lambda b, h, s, k: (b, h, s, 0))),
        scratch_shapes=[pltpu.VMEM((TS, 3 * Dh), jnp.float32)],
        compiler_params=_cparams(("parallel", "parallel", "parallel", "arbitrary")),
    )(xn, wqkv, cos, sin)


def attention(q, kv, mask3, cfg):
    B, S, nH, Dh = cfg["B"], cfg["S"], cfg["nH"], cfg["Dh"]
    TSQ = _tile(S, TSQ_ATTN)
    kern = functools.partial(attn_kernel, Dh=Dh)
    return pl.pallas_call(
        kern,
        out_shape=jax.ShapeDtypeStruct((B, nH, S, Dh), jnp.bfloat16),
        grid=(B, nH, S // TSQ),
        in_specs=[
            pl.BlockSpec((None, None, TSQ, Dh), lambda b, h, s: (b, h, s, 0)),   # q tile
            pl.BlockSpec((None, None, S, 2 * Dh), lambda b, h, s: (b, h, 0, 0)),  # full-S [k|v]
            pl.BlockSpec((None, 1, S), lambda b, h, s: (b, 0, 0)),                # padding mask
        ],
        out_specs=pl.BlockSpec((None, None, TSQ, Dh), lambda b, h, s: (b, h, s, 0)),
        compiler_params=_cparams(("parallel", "parallel", "parallel")),
    )(q, kv, mask3)


def attn_out(x, ctx, wo_h, cfg):
    B, S, H, nH, Dh = cfg["B"], cfg["S"], cfg["H"], cfg["nH"], cfg["Dh"]
    TS, TN = _tile(S, TS_MM), _tile(H, TN_MM)
    return pl.pallas_call(
        attn_out_kernel,
        out_shape=jax.ShapeDtypeStruct((B, S, H), jnp.float32),
        grid=(B, S // TS, H // TN, nH),
        in_specs=[
            pl.BlockSpec((None, TS, TN), lambda b, s, n, h: (b, s, n)),           # residual x
            pl.BlockSpec((None, None, TS, Dh), lambda b, s, n, h: (b, h, s, 0)),  # ctx head slab
            pl.BlockSpec((None, Dh, TN), lambda b, s, n, h: (h, 0, n)),           # Wo head slab
        ],
        out_specs=pl.BlockSpec((None, TS, TN), lambda b, s, n, h: (b, s, n)),
        scratch_shapes=[pltpu.VMEM((TS, TN), jnp.float32)],
        input_output_aliases={0: 0},   # residual buffer reused in place
        compiler_params=_cparams(("parallel", "parallel", "parallel", "arbitrary")),
    )(x, ctx, wo_h)


def mlp_in(xn, win, b_in, cfg):
    B, S, H, M = cfg["B"], cfg["S"], cfg["H"], cfg["M"]
    TS, TN, TK = _tile(S, TS_MM), _tile(M, TN_MM), _tile(H, TK_MM)
    return pl.pallas_call(
        mlp_in_kernel,
        out_shape=jax.ShapeDtypeStruct((B, S, M), jnp.bfloat16),
        grid=(B, S // TS, M // TN, H // TK),
        in_specs=[
            pl.BlockSpec((None, TS, TK), lambda b, s, n, k: (b, s, k)),  # ln1(x)
            pl.BlockSpec((TK, TN), lambda b, s, n, k: (k, n)),           # Win
            pl.BlockSpec((1, TN), lambda b, s, n, k: (0, n)),            # bin
        ],
        out_specs=pl.BlockSpec((None, TS, TN), lambda b, s, n, k: (b, s, n)),
        scratch_shapes=[pltpu.VMEM((TS, TN), jnp.float32)],
        compiler_params=_cparams(("parallel", "parallel", "parallel", "arbitrary")),
    )(xn, win, b_in)


def mlp_out(res, a, wout, bout, cfg):
    B, S, H, M = cfg["B"], cfg["S"], cfg["H"], cfg["M"]
    TS, TN, TK = _tile(S, TS_MM), _tile(H, TN_MM), _tile(M, TK_MM)
    return pl.pallas_call(
        mlp_out_kernel,
        out_shape=jax.ShapeDtypeStruct((B, S, H), jnp.float32),
        grid=(B, S // TS, H // TN, M // TK),
        in_specs=[
            pl.BlockSpec((None, TS, TN), lambda b, s, n, k: (b, s, n)),  # residual (x + attn_out)
            pl.BlockSpec((None, TS, TK), lambda b, s, n, k: (b, s, k)),  # gelu activations
            pl.BlockSpec((TK, TN), lambda b, s, n, k: (k, n)),           # Wout
            pl.BlockSpec((1, TN), lambda b, s, n, k: (0, n)),            # bout
        ],
        out_specs=pl.BlockSpec((None, TS, TN), lambda b, s, n, k: (b, s, n)),
        scratch_shapes=[pltpu.VMEM((TS, TN), jnp.float32)],
        input_output_aliases={0: 0},   # residual buffer reused in place
        compiler_params=_cparams(("parallel", "parallel", "parallel", "arbitrary")),
    )(res, a, wout, bout)


def lm_head(xnf, wlm, blm, cfg):
    B, S, H, V = cfg["B"], cfg["S"], cfg["H"], cfg["V"]
    TS, TV, TK = _tile(S, TS_MM), _tile(V, TN_MM), _tile(H, TK_MM)
    return pl.pallas_call(
        lm_head_kernel,
        out_shape=jax.ShapeDtypeStruct((B, S, V), jnp.float32),
        grid=(B, S // TS, V // TV, H // TK),
        in_specs=[
            pl.BlockSpec((None, TS, TK), lambda b, s, n, k: (b, s, k)),  # ln_f(x)
            pl.BlockSpec((TK, TV), lambda b, s, n, k: (k, n)),           # Wlm
            pl.BlockSpec((1, TV), lambda b, s, n, k: (0, n)),            # blm
        ],
        out_specs=pl.BlockSpec((None, TS, TV), lambda b, s, n, k: (b, s, n)),
        scratch_shapes=[pltpu.VMEM((TS, TV), jnp.float32)],
        compiler_params=_cparams(("parallel", "parallel", "parallel", "arbitrary")),
    )(xnf, wlm, blm)


# ----------------------------------------------------------------------------
# glue: rotary tables, host-side weight packing, parameter init, forward
# ----------------------------------------------------------------------------
def rotary_base(S, Dh):
    """cos/sin of the base angles, shape [S, Dh//2] (numpy, f32)."""
    inv_freq = 1.0 / (10000.0 ** (np.arange(0, Dh, 2, dtype=np.float64) / Dh))
    ang = np.arange(S, dtype=np.float64)[:, None] * inv_freq[None, :]
    return np.cos(ang).astype(np.float32), np.sin(ang).astype(np.float32)


def preprocess_params(params, cfg):
    """Host-side weight packing:
      * Wq/Wk columns de-interleaved per head ([even | odd]) so GPT-J
        rotate_every_two becomes a half-split rotation; scores are invariant
        under this consistent per-head column permutation of q and k.
      * 1/sqrt(Dh) folded into Wq.
      * Wq/Wk/Wv packed head-major into one [nH, H, 3*Dh] tensor so the QKV
        projection and attention are per-head tiled ((8,128)-friendly).
      * Wo reshaped head-major to [nH, Dh, H] for the uniform K=Dh reduction.
      * matmul weights cast to bf16 (f32 accumulation in-kernel)."""
    H, nH, Dh, S = cfg["H"], cfg["nH"], cfg["Dh"], cfg["S"]
    cos_b, sin_b = rotary_base(S, Dh)

    def deinterleave(w, scale=1.0):
        w = np.asarray(w) * scale                                   # [nH, H, Dh]
        return np.concatenate([w[:, :, 0::2], w[:, :, 1::2]], axis=-1)

    layers = []
    for lp in params["layers"]:
        wqkv = np.concatenate([
            deinterleave(lp["wq"], 1.0 / math.sqrt(Dh)),
            deinterleave(lp["wk"]),
            np.asarray(lp["wv"]),
        ], axis=-1)                                                 # [nH, H, 3*Dh]
        wo_h = np.asarray(lp["wo"]).reshape(nH, Dh, H)              # [nH, Dh, H]
        layers.append({
            "ln1_g": lp["ln1_g"], "ln1_b": lp["ln1_b"],
            "wqkv": jnp.asarray(wqkv, dtype=jnp.bfloat16),
            "wo_h": jnp.asarray(wo_h, dtype=jnp.bfloat16),
            "win": lp["win"].astype(jnp.bfloat16),
            "bin": lp["bin"],
            "wout": lp["wout"].astype(jnp.bfloat16),
            "bout": lp["bout"],
        })
    return {
        "layers": layers,
        "cos": jnp.asarray(cos_b), "sin": jnp.asarray(sin_b),       # [S, Dh//2] f32
        "wte": params["wte"],
        "lnf_g": params["lnf_g"], "lnf_b": params["lnf_b"],
        "wlm": params["wlm"].astype(jnp.bfloat16), "blm": params["blm"],
    }


def init_params(key, cfg):
    B, S, H, nH, Dh, M, V, L = (cfg[k] for k in
                                ("B", "S", "H", "nH", "Dh", "M", "V", "L"))
    ks = jax.random.split(key, 5 + L)

    def nrm(k, shape, scale=0.02):
        return (scale * jax.random.normal(k, shape)).astype(jnp.float32)

    params = {
        "wte": nrm(ks[0], (V, H)),
        "lnf_g": 1.0 + nrm(ks[1], (1, H), 0.1),
        "lnf_b": nrm(ks[2], (1, H), 0.1),
        "wlm": nrm(ks[3], (H, V)),
        "blm": nrm(ks[4], (1, V)),
        "layers": [],
    }
    for i in range(L):
        lk = jax.random.split(ks[5 + i], 10)
        params["layers"].append({
            "ln1_g": 1.0 + nrm(lk[0], (1, H), 0.1),
            "ln1_b": nrm(lk[1], (1, H), 0.1),
            "wq": nrm(lk[2], (nH, H, Dh)),
            "wk": nrm(lk[3], (nH, H, Dh)),
            "wv": nrm(lk[4], (nH, H, Dh)),
            "wo": nrm(lk[5], (H, H)),
            "win": nrm(lk[6], (H, M)),
            "bin": nrm(lk[7], (1, M)),
            "wout": nrm(lk[8], (M, H)),
            "bout": nrm(lk[9], (1, H)),
        })
    return params


def collaborator_forward(input_ids, attention_mask, kp, cfg):
    """Pallas implementation of GPTJCloudEdgeCollaborator.forward."""
    x = jnp.take(kp["wte"], input_ids, axis=0)               # embed (glue gather)
    mask3 = attention_mask.astype(jnp.float32)[:, None, :]   # [B, 1, S]
    for lp in kp["layers"]:
        # NOTE: ln1 output is reused in bf16 by both QKV and MLP branches
        # (tiny per-layer drift vs. the f32 reference, within test tolerance).
        xn = layer_norm(x, lp["ln1_g"], lp["ln1_b"], cfg)     # [B,S,H] bf16
        q, kv = qkv_rotary(xn, lp["wqkv"], kp["cos"], kp["sin"], cfg)
        ctx = attention(q, kv, mask3, cfg)                    # [B,nH,S,Dh] bf16
        h1 = attn_out(x, ctx, lp["wo_h"], cfg)                # x + ctx @ Wo
        a = mlp_in(xn, lp["win"], lp["bin"], cfg)             # gelu(xn @ Win + bin)
        x = mlp_out(h1, a, lp["wout"], lp["bout"], cfg)       # + a @ Wout + bout
    xnf = layer_norm(x, kp["lnf_g"], kp["lnf_b"], cfg)
    return lm_head(xnf, kp["wlm"], kp["blm"], cfg)


# ----------------------------------------------------------------------------
# pure-JAX f32 reference (original per-head weights, interleaved GPT-J rotary)
# ----------------------------------------------------------------------------
def reference_forward(input_ids, attention_mask, params, cfg):
    B, S, H, nH, Dh = cfg["B"], cfg["S"], cfg["H"], cfg["nH"], cfg["Dh"]
    cos_b, sin_b = rotary_base(S, Dh)
    cos = jnp.asarray(np.repeat(cos_b, 2, axis=-1))   # duplicate_interleave [S, Dh]
    sin = jnp.asarray(np.repeat(sin_b, 2, axis=-1))

    def ln(x, g, b):
        mu = x.mean(-1, keepdims=True)
        var = ((x - mu) ** 2).mean(-1, keepdims=True)
        return (x - mu) / jnp.sqrt(var + EPS) * g + b

    def rot2(t):  # GPT-J rotate_every_two
        t1 = t[..., ::2]
        t2 = t[..., 1::2]
        return jnp.stack((-t2, t1), axis=-1).reshape(t.shape)

    causal = jnp.where(jnp.arange(S)[:, None] >= jnp.arange(S)[None, :], 0.0, NEG)
    pad = (1.0 - attention_mask.astype(jnp.float32)) * NEG
    bias = causal[None, :, :] + pad[:, None, :]

    x = params["wte"][input_ids]
    for lp in params["layers"]:
        xn = ln(x, lp["ln1_g"], lp["ln1_b"])
        q = jnp.einsum("bsh,nhd->bnsd", xn, lp["wq"])
        k = jnp.einsum("bsh,nhd->bnsd", xn, lp["wk"])
        q = q * cos + rot2(q) * sin
        k = k * cos + rot2(k) * sin
        scores = jnp.einsum("bnsd,bntd->bnst", q, k) / jnp.sqrt(jnp.float32(Dh))
        scores = scores + bias[:, None]
        attn = jax.nn.softmax(scores, axis=-1)
        v = jnp.einsum("bsh,nhd->bnsd", xn, lp["wv"])
        ctx = jnp.einsum("bnst,bntd->bnsd", attn, v)
        ctx_m = ctx.transpose(0, 2, 1, 3).reshape(B, S, H)
        attn_out_ = ctx_m @ lp["wo"]
        h = jnp.einsum("bsh,hm->bsm", xn, lp["win"]) + lp["bin"]
        mlp = jnp.einsum("bsm,mh->bsh", _gelu_new(h), lp["wout"]) + lp["bout"]
        x = x + attn_out_ + mlp
    xn = ln(x, params["lnf_g"], params["lnf_b"])
    return jnp.einsum("bsh,hv->bsv", xn, params["wlm"]) + params["blm"]


# ----------------------------------------------------------------------------
if __name__ == "__main__":
    cfg = dict(B=2, S=8, H=32, nH=4, Dh=8, M=128, V=64, L=2)
    key = jax.random.PRNGKey(0)
    params = init_params(key, cfg)
    kparams = preprocess_params(params, cfg)

    ids_key = jax.random.fold_in(key, 999)
    input_ids = jax.random.randint(ids_key, (cfg["B"], cfg["S"]), 0, cfg["V"],
                                   dtype=jnp.int32)
    attention_mask = jnp.ones((cfg["B"], cfg["S"]), dtype=jnp.int32)

    logits = collaborator_forward(input_ids, attention_mask, kparams, cfg)
    logits = jax.block_until_ready(logits)

    ref = reference_forward(input_ids, attention_mask, params, cfg)
    np.testing.assert_allclose(np.asarray(logits), np.asarray(ref),
                               rtol=2e-2, atol=2e-2)
    print("KERNEL_OK")
</pallas_src>

<mosaic_0001>
module attributes {stable_mosaic.version = 11 : i64} {
  func.func @ln_kernel(%arg0: i32, %arg1: i32, %arg2: memref<1x8x32xf32, #tpu.memory_space<vmem>>, %arg3: memref<1x32xf32, #tpu.memory_space<vmem>>, %arg4: memref<1x32xf32, #tpu.memory_space<vmem>>, %arg5: memref<1x8x32xbf16, #tpu.memory_space<vmem>>) attributes {dimension_semantics = [#tpu.dimension_semantics<parallel>, #tpu.dimension_semantics<parallel>], iteration_bounds = array<i64: 2, 1>, scalar_prefetch = 0 : i64, scratch_operands = 0 : i64, tpu.core_type = #tpu.core_type<tc>, window_params = [{transform_indices = @transform_0, window_bounds = array<i64: 1, 8, 32>}, {pipeline_mode = #tpu.pipeline_mode<synchronous>, transform_indices = @transform_1, window_bounds = array<i64: 1, 32>}, {pipeline_mode = #tpu.pipeline_mode<synchronous>, transform_indices = @transform_2, window_bounds = array<i64: 1, 32>}, {transform_indices = @transform_3, window_bounds = array<i64: 1, 8, 32>}]} {
    %c0 = arith.constant 0 : index
    %c0_0 = arith.constant 0 : index
    %c0_1 = arith.constant 0 : index
    %0 = vector.load %arg2[%c0, %c0_0, %c0_1] : memref<1x8x32xf32, #tpu.memory_space<vmem>>, vector<1x8x32xf32>
    %1 = vector.shape_cast %0 : vector<1x8x32xf32> to vector<8x32xf32>
    %c0_2 = arith.constant 0 : index
    %c0_3 = arith.constant 0 : index
    %2 = vector.load %arg3[%c0_2, %c0_3] : memref<1x32xf32, #tpu.memory_space<vmem>>, vector<1x32xf32>
    %c0_4 = arith.constant 0 : index
    %c0_5 = arith.constant 0 : index
    %3 = vector.load %arg4[%c0_4, %c0_5] : memref<1x32xf32, #tpu.memory_space<vmem>>, vector<1x32xf32>
    %cst = arith.constant dense<0.000000e+00> : vector<8xf32>
    %4 = vector.multi_reduction <add>, %1, %cst [1] : vector<8x32xf32> to vector<8xf32>
    %5 = vector.shape_cast %4 : vector<8xf32> to vector<8x1xf32>
    %cst_6 = arith.constant 3.200000e+01 : f32
    %6 = vector.broadcast %cst_6 : f32 to vector<8x1xf32>
    %7 = arith.divf %5, %6 : vector<8x1xf32>
    %8 = vector.broadcast %7 : vector<8x1xf32> to vector<8x32xf32>
    %9 = arith.subf %1, %8 : vector<8x32xf32>
    %10 = arith.mulf %9, %9 : vector<8x32xf32>
    %cst_7 = arith.constant dense<0.000000e+00> : vector<8xf32>
    %11 = vector.multi_reduction <add>, %10, %cst_7 [1] : vector<8x32xf32> to vector<8xf32>
    %12 = vector.shape_cast %11 : vector<8xf32> to vector<8x1xf32>
    %cst_8 = arith.constant 3.200000e+01 : f32
    %13 = vector.broadcast %cst_8 : f32 to vector<8x1xf32>
    %14 = arith.divf %12, %13 : vector<8x1xf32>
    %15 = vector.broadcast %7 : vector<8x1xf32> to vector<8x32xf32>
    %16 = arith.subf %1, %15 : vector<8x32xf32>
    %cst_9 = arith.constant 9.99999974E-6 : f32
    %17 = vector.broadcast %cst_9 : f32 to vector<8x1xf32>
    %18 = arith.addf %14, %17 : vector<8x1xf32>
    %19 = math.rsqrt %18 : vector<8x1xf32>
    %20 = vector.broadcast %19 : vector<8x1xf32> to vector<8x32xf32>
    %21 = arith.mulf %16, %20 : vector<8x32xf32>
    %22 = vector.broadcast %2 : vector<1x32xf32> to vector<8x32xf32>
    %23 = arith.mulf %21, %22 : vector<8x32xf32>
    %24 = vector.broadcast %3 : vector<1x32xf32> to vector<8x32xf32>
    %25 = arith.addf %23, %24 : vector<8x32xf32>
    %26 = arith.truncf %25 : vector<8x32xf32> to vector<8x32xbf16>
    %c0_10 = arith.constant 0 : index
    %c0_11 = arith.constant 0 : index
    %c0_12 = arith.constant 0 : index
    %27 = vector.load %arg5[%c0_10, %c0_11, %c0_12] : memref<1x8x32xbf16, #tpu.memory_space<vmem>>, vector<1x8x32xbf16>
    %28 = vector.shape_cast %27 : vector<1x8x32xbf16> to vector<8x32xbf16>
    %29 = vector.shape_cast %26 : vector<8x32xbf16> to vector<1x8x32xbf16>
    tpu.vector_store %arg5[%c0_10, %c0_11, %c0_12], %29 {strides = array<i32>} : memref<1x8x32xbf16, #tpu.memory_space<vmem>>, vector<1x8x32xbf16>,
    return
  }
  func.func @transform_0(%arg0: i32, %arg1: i32) -> (i32, i32, i32) {
    %c0_i32 = arith.constant 0 : i32
    %c0_i32_0 = arith.constant 0 : i32
    return %arg0, %arg1, %c0_i32 : i32, i32, i32
  }
  func.func @transform_1(%arg0: i32, %arg1: i32) -> (i32, i32) {
    %c0_i32 = arith.constant 0 : i32
    %c0_i32_0 = arith.constant 0 : i32
    %c0_i32_1 = arith.constant 0 : i32
    return %c0_i32, %c0_i32_0 : i32, i32
  }
  func.func @transform_2(%arg0: i32, %arg1: i32) -> (i32, i32) {
    %c0_i32 = arith.constant 0 : i32
    %c0_i32_0 = arith.constant 0 : i32
    %c0_i32_1 = arith.constant 0 : i32
    return %c0_i32, %c0_i32_0 : i32, i32
  }
  func.func @transform_3(%arg0: i32, %arg1: i32) -> (i32, i32, i32) {
    %c0_i32 = arith.constant 0 : i32
    %c0_i32_0 = arith.constant 0 : i32
    return %arg0, %arg1, %c0_i32 : i32, i32, i32
  }
}

</mosaic_0001>

<llo_original>
// kernel: tpu_custom_call.1
$region0: #{tpu_custom_call.1}
  #allocation0 [shape = 'u32[]', space=smem, size = 0x4, offset = 0x4, fixed_abs, tag = 'smem constant byte address 0x4 - core index']
  #allocation1 [shape = 'u32[72,128]{1,0:T(1,128)}', space=vmem, size = 0x9000, scoped, tag = 'internal scratch']
  %s0 = inlined_call_operand.hbm [shape: f32[2,8,32], index: 0, kind: input, shape index: {}]
  %s1 = inlined_call_operand.hbm [shape: f32[1,32], index: 1, kind: input, shape index: {}]
  %s2 = inlined_call_operand.vmem [shape: f32[1,32], index: 2, kind: input, shape index: {}]
  %s3 = inlined_call_operand.hbm [shape: bf16[2,8,32], index: 3, kind: output, shape index: {}]
  %s4 = sld [smem:[#allocation0]]
  $region53: #{tpu_custom_call.1} parent=0
    _
  %s6 = ssub.s32 1, %s4
  %s7 = scalar_select 0, %s6, %s4
  $region1: #{tpu_custom_call.1} parent=0
    #allocation2 [shape = 'u8[8192]{0}', space=vmem, size = 0x2000, scoped, tag = 'input window, operand 0']
    #allocation3 [shape = 's32[2]{0}', space=sflag, size = 0x8, scoped, tag = 'scoped memory for tpu_custom_call.1']
    #allocation4 [shape = 's32[2]{0}', space=sflag, size = 0x8, scoped, tag = 'scoped memory for tpu_custom_call.1']
    #allocation5 [shape = 'u8[512]{0}', space=vmem, size = 0x400, scoped, tag = 'input window, operand 1, single buffered']
    #allocation6 [shape = 's32[1]{0}', space=sflag, size = 0x4, scoped, tag = 'scoped memory for tpu_custom_call.1']
    #allocation7 [shape = 'u8[4096]{0}', space=vmem, size = 0x1000, scoped, tag = 'output window, operand 0']
    %8 = vsyncpa [#allocation3], 0
    %s9 = scalar_lea.sflag [#allocation3], 1
    %10 = vsyncpa %s9, 0
    %11 = vsyncpa [#allocation6], 0
    %12 = vsyncpa [#allocation4], 0
    %s13 = scalar_lea.sflag [#allocation4], 1
    %14 = vsyncpa %s13, 0
    loop: start=0, step=1, limit=4
    $region2: #{tpu_custom_call.1} parent=1 // loop_pre_header
      _
    $region3: #{tpu_custom_call.1} parent=1 // loop_header
      %s16 = sphi 0, %s20
      %p17 = scmp.ge.s32.totalorder %s16, 4
      %s23 = sphi 0, %s35
      %s24 = sphi 0, %s31
      %s25 = sphi 0, %s23
      %s26 = sphi 0, %s24
      %s27 = sphi 0, %s25
      %s28 = sphi 0, %s26
      %s40 = sphi 0, %s42
      %s43 = sphi 0, %s40
      %s44 = sphi 0, %s43
      %s60 = sphi 0, %s44
      %s64 = sphi 0, %s64
      %s66 = sphi 0, %s64
      %s67 = sphi 0, %s66
      %s81 = sphi 0, %s67
      %s85 = sphi 0, %s85
      %s87 = sphi 0, %s85
      %s88 = sphi 0, %s87
      %s102 = sphi 0, %s88
      %s110 = sphi 0, %s112
      %s113 = sphi 0, %s110
      %s114 = sphi 0, %s113
      %s130 = sphi 0, %s114
    $region4: #{tpu_custom_call.1} parent=1 // loop_header_branch
      %19 = sbr.rel (%p17) target = $region8
    $region5: #{tpu_custom_call.1} parent=1 // loop_body
      %s21 = ssub.s32 %s16, 1
      %s22 = ssub.s32 %s16, 2
      %s29 = sadd.s32 1, %s24
      %p30 = scmp.ge.s32.totalorder %s29, 1
      %s31 = scalar_select %p30, 0, %s29
      %s32 = sadd.s32 1, %s23
      %s33 = scalar_select %p30, %s32, %s23
      %p34 = scmp.ge.s32.totalorder %s33, 2
      %s35 = scalar_select %p34, 0, %s33
      %s36 = ssub.s32 %s23, %s35
      %s37 = ssub.s32 %s24, %s31
      %s38 = sor.u32 %s36, %s37
      %p39 = scmp.eq.s32.totalorder %s38, 0
      %s41 = sadd.s32 %s40, 1
      %s42 = scalar_select %p39, %s40, %s41
      %p45 = pneg %p39
      %p46 = scmp.eq.s32.totalorder %s16, 1
      %p47 = por %p45, %p46
      %p48 = scmp.ne.s32.totalorder %s40, %s43
      %p49 = scmp.eq.s32.totalorder %s16, 0
      %p50 = por %p48, %p49
      %p51 = scmp.ne.s32.totalorder %s40, %s43
      %p52 = scmp.eq.s32.totalorder %s21, 1
      %p53 = por %p51, %p52
      %p54 = scmp.ne.s32.totalorder %s43, %s44
      %p55 = scmp.eq.s32.totalorder %s21, 0
      %p56 = por %p54, %p55
      %p57 = scmp.ne.s32.totalorder %s43, %s44
      %p58 = scmp.eq.s32.totalorder %s22, 1
      %p59 = por %p57, %p58
      %p61 = scmp.ne.s32.totalorder %s44, %s60
      %p62 = scmp.eq.s32.totalorder %s22, 0
      %p63 = por %p61, %p62
      %s65 = sadd.s32 %s64, 1
      %p68 = scmp.eq.s32.totalorder %s16, 1
      %p69 = scmp.ne.s32.totalorder %s64, %s66
      %p70 = scmp.eq.s32.totalorder %s16, 0
      %p71 = por %p69, %p70
      %p72 = scmp.ne.s32.totalorder %s64, %s66
      %p73 = scmp.eq.s32.totalorder %s21, 1
      %p74 = por %p72, %p73
      %p75 = scmp.ne.s32.totalorder %s66, %s67
      %p76 = scmp.eq.s32.totalorder %s21, 0
      %p77 = por %p75, %p76
      %p78 = scmp.ne.s32.totalorder %s66, %s67
      %p79 = scmp.eq.s32.totalorder %s22, 1
      %p80 = por %p78, %p79
      %p82 = scmp.ne.s32.totalorder %s67, %s81
      %p83 = scmp.eq.s32.totalorder %s22, 0
      %p84 = por %p82, %p83
      %s86 = sadd.s32 %s85, 1
      %p89 = scmp.eq.s32.totalorder %s16, 1
      %p90 = scmp.ne.s32.totalorder %s85, %s87
      %p91 = scmp.eq.s32.totalorder %s16, 0
      %p92 = por %p90, %p91
      %p93 = scmp.ne.s32.totalorder %s85, %s87
      %p94 = scmp.eq.s32.totalorder %s21, 1
      %p95 = por %p93, %p94
      %p96 = scmp.ne.s32.totalorder %s87, %s88
      %p97 = scmp.eq.s32.totalorder %s21, 0
      %p98 = por %p96, %p97
      %p99 = scmp.ne.s32.totalorder %s87, %s88
      %p100 = scmp.eq.s32.totalorder %s22, 1
      %p101 = por %p99, %p100
      %p103 = scmp.ne.s32.totalorder %s88, %s102
      %p104 = scmp.eq.s32.totalorder %s22, 0
      %p105 = por %p103, %p104
      %s106 = ssub.s32 %s23, %s35
      %s107 = ssub.s32 %s24, %s31
      %s108 = sor.u32 %s106, %s107
      %p109 = scmp.eq.s32.totalorder %s108, 0
      %s111 = sadd.s32 %s110, 1
      %s112 = scalar_select %p109, %s110, %s111
      %p115 = pneg %p109
      %p116 = scmp.eq.s32.totalorder %s16, 1
      %p117 = por %p115, %p116
      %p118 = scmp.ne.s32.totalorder %s110, %s113
      %p119 = scmp.eq.s32.totalorder %s16, 0
      %p120 = por %p118, %p119
      %p121 = scmp.ne.s32.totalorder %s110, %s113
      %p122 = scmp.eq.s32.totalorder %s21, 1
      %p123 = por %p121, %p122
      %p124 = scmp.ne.s32.totalorder %s113, %s114
      %p125 = scmp.eq.s32.totalorder %s21, 0
      %p126 = por %p124, %p125
      %p127 = scmp.ne.s32.totalorder %s113, %s114
      %p128 = scmp.eq.s32.totalorder %s22, 1
      %p129 = por %p127, %p128
      %p131 = scmp.ne.s32.totalorder %s114, %s130
      %p132 = scmp.eq.s32.totalorder %s22, 0
      %p133 = por %p131, %p132
      %p134 = scmp.le.s32.totalorder 1, %s16
      %p135 = scmp.lt.s32.totalorder %s16, 3
      %p136 = pnand %p134, %p135
      %p137 = pneg %p136
      // Predicated region
      $region9: #{tpu_custom_call.1} parent=5 // pred_check
        _
      $region10: #{tpu_custom_call.1} parent=5 // pred_check_branch
        %139 = sbr.rel (%p136) target = $region12
      $region11: #{tpu_custom_call.1} parent=5 // pred_region
        %s140 = ssub.s32 %s16, 1
        // Predicated region
        $region13: #{tpu_custom_call.1} parent=11 // pred_check
          %p141 = pneg %p77
        $region14: #{tpu_custom_call.1} parent=11 // pred_check_branch
          %143 = sbr.rel (%p141) target = $region16
        $region15: #{tpu_custom_call.1} parent=11 // pred_region
          %145 = vsyncadd [#allocation6], 0
          %s147 = sshll.u32 %s1, 4
          %s148 = int_to_ptr.hbm [resolvable:$true] %s147
          %s149 = sshll.u32 [#allocation5], 4
          %s150 = int_to_ptr.vmem [resolvable:$true] %s149
          %152 = dma.hbm_to_vmem [thread:$0]  %s148, 16, %s150, [#allocation6]
        $region16: #{tpu_custom_call.1} parent=11 // pred_fallthru
          _
        // Predicated region
        $region17: #{tpu_custom_call.1} parent=11 // pred_check
          %p153 = pneg %p98
        $region18: #{tpu_custom_call.1} parent=11 // pred_check_branch
          %155 = sbr.rel (%p153) target = $region20
        $region19: #{tpu_custom_call.1} parent=11 // pred_region
          _
        $region20: #{tpu_custom_call.1} parent=11 // pred_fallthru
          _
      $region12: #{tpu_custom_call.1} parent=5 // pred_fallthru
        _
      %p156 = scmp.lt.s32.totalorder %s16, 2
      // Predicated region
      $region21: #{tpu_custom_call.1} parent=5 // pred_check
        %p157 = pneg %p156
      $region22: #{tpu_custom_call.1} parent=5 // pred_check_branch
        %159 = sbr.rel (%p157) target = $region24
      $region23: #{tpu_custom_call.1} parent=5 // pred_region
        // Predicated region
        $region25: #{tpu_custom_call.1} parent=23 // pred_check
          %p160 = pneg %p50
        $region26: #{tpu_custom_call.1} parent=23 // pred_check_branch
          %162 = sbr.rel (%p160) target = $region28
        $region27: #{tpu_custom_call.1} parent=23 // pred_region
          %s163 = sand.u32 %s40, 1
          %s164 = scalar_lea.sflag [#allocation3], %s163
          %s165 = sand.u32 %s40, 1
          %s166 = smul.addr %s165, 8
          %s167 = scalar_lea.vmem [#allocation2], %s166
          %169 = vsyncadd %s164, 0
          %s170 = sadd.s32 %s24, %s23
          %s171 = smul.addr %s170, 8
          %s172 = scalar_lea.hbm %s0, %s171
          %s174 = sshll.u32 %s172, 4
          %s175 = int_to_ptr.hbm [resolvable:$true] %s174
          %s176 = sshll.u32 %s167, 4
          %s177 = int_to_ptr.vmem [resolvable:$true] %s176
          %179 = dma.hbm_to_vmem [thread:$0]  %s175, 128, %s177, %s164
        $region28: #{tpu_custom_call.1} parent=23 // pred_fallthru
          _
      $region24: #{tpu_custom_call.1} parent=5 // pred_fallthru
        _
      %p180 = scmp.le.s32.totalorder 1, %s16
      %p181 = scmp.lt.s32.totalorder %s16, 3
      %p182 = pnand %p180, %p181
      %p183 = pneg %p182
      // Predicated region
      $region29: #{tpu_custom_call.1} parent=5 // pred_check
        _
      $region30: #{tpu_custom_call.1} parent=5 // pred_check_branch
        %185 = sbr.rel (%p182) target = $region32
      $region31: #{tpu_custom_call.1} parent=5 // pred_region
        %s186 = ssub.s32 %s16, 1
        %s187 = sand.u32 %s43, 1
        %s188 = scalar_lea.sflag [#allocation3], %s187
        %s189 = sand.u32 %s43, 1
        %s190 = smul.addr %s189, 8
        %s191 = scalar_lea.vmem [#allocation2], %s190
        // Predicated region
        $region33: #{tpu_custom_call.1} parent=31 // pred_check
          %p192 = pneg %p56
        $region34: #{tpu_custom_call.1} parent=31 // pred_check_branch
          %194 = sbr.rel (%p192) target = $region36
        $region35: #{tpu_custom_call.1} parent=31 // pred_region
          %196 = dma.done %s188, 128
        $region36: #{tpu_custom_call.1} parent=31 // pred_fallthru
          _
        // Predicated region
        $region37: #{tpu_custom_call.1} parent=31 // pred_check
          %p197 = pneg %p77
        $region38: #{tpu_custom_call.1} parent=31 // pred_check_branch
          %199 = sbr.rel (%p197) target = $region40
        $region39: #{tpu_custom_call.1} parent=31 // pred_region
          %201 = dma.done [#allocation6], 16
        $region40: #{tpu_custom_call.1} parent=31 // pred_fallthru
          _
        %s202 = sand.u32 %s43, 1
        %s203 = scalar_lea.sflag [#allocation3], %s202
        %s204 = sand.u32 %s43, 1
        %s205 = smul.addr %s204, 8
        %s206 = scalar_lea.vmem [#allocation2], %s205
        %p207 = pneg %p56
        %p208 = pneg %p53
        %p209 = pneg %p77
        %p210 = pneg %p74
        %p211 = pneg %p98
        %p212 = pneg %p95
        %p213 = pneg %p126
        %p214 = pneg %p123
        %s215 = sand.u32 %s113, 1
        %s216 = scalar_lea.sflag [#allocation4], %s215
        %s217 = sand.u32 %s113, 1
        %s218 = smul.addr %s217, 4
        %s219 = scalar_lea.vmem [#allocation7], %s218
        %v220 = vld [vmem:[%s191] sm:$0xff]
        %v221 = vld [vmem:[#allocation5] sm:$0x1]
        %v222 = vld [vmem:[%s2] sm:$0x1]
        %vm223 = vcmask 261120
        %v224 = vsel %vm223, %v220, 0.0
        %225 = vadd.xlane.f32.xlu0 %v224
        %v226 = vpop.xlane.xlu0 %225
        %v227 = vrcp.pop 32.0
        %v228 = vmul.f32 32.0, %v227
        %v229 = vsub.f32 1.0, %v228
        %v230 = vmul.f32 %v227, %v229
        %v231 = vadd.f32 %v227, %v230
        %vm232 = vweird.f32 %v227
        %v233 = vsel %vm232, %v227, %v231
        %v234 = vmul.f32 %v226, %v233
        %v235 = vsub.f32 %v220, %v234
        %v236 = vmul.f32 %v235, %v235
        %v237 = vsel %vm223, %v236, 0.0
        %238 = vadd.xlane.f32.xlu0 %v237
        %v239 = vpop.xlane.xlu0 %238
        %v240 = vmul.f32 %v239, %v233
        %v241 = vadd.f32 %v240, 1e-05
        %v242 = vrsqrt.pop %v241
        %v243 = vmul.f32 %v242, %v241
        %v244 = vmul.f32 %v243, %v242
        %v245 = vmul.f32 0.5, %v244
        %v246 = vsub.f32 1.5, %v245
        %v247 = vmul.f32 %v242, %v246
        %vm248 = vweird.f32 %v241
        %vm249 = vweird.f32 %v242
        %vm250 = vmor %vm248, %vm249
        %v251 = vsel %vm250, %v242, %v247
        %v252 = vmul.f32 %v235, %v251
        %v254 = vperm.slane %v221, 0
        %v256 = vmul.f32 %v252, %v254
        %v258 = vperm.slane %v222, 0
        %v260 = vadd.f32 %v256, %v258
        %v261 = vpack.c.bf16 %v260, %v260
        %vm262 = vcmask 257024
        %263 = vst.msk [vmem:[%s219] sm:$0xf] %vm262, %v261
        %s264 = sand.u32 %s113, 1
        %s265 = scalar_lea.sflag [#allocation4], %s264
        %s266 = sand.u32 %s113, 1
        %s267 = smul.addr %s266, 4
        %s268 = scalar_lea.vmem [#allocation7], %s267
        // Predicated region
        $region41: #{tpu_custom_call.1} parent=31 // pred_check
          %p269 = pneg %p123
        $region42: #{tpu_custom_call.1} parent=31 // pred_check_branch
          %271 = sbr.rel (%p269) target = $region44
        $region43: #{tpu_custom_call.1} parent=31 // pred_region
          %273 = vsyncadd %s265, 0
          %s274 = sadd.s32 %s26, %s25
          %s275 = smul.addr %s274, 4
          %s276 = scalar_lea.hbm %s3, %s275
          %s278 = sshll.u32 %s268, 4
          %s279 = int_to_ptr.vmem [resolvable:$true] %s278
          %s280 = sshll.u32 %s276, 4
          %s281 = int_to_ptr.hbm [resolvable:$true] %s280
          %283 = dma.vmem_to_hbm [thread:$0]  %s279, 64, %s281, %s265
        $region44: #{tpu_custom_call.1} parent=31 // pred_fallthru
          _
      $region32: #{tpu_custom_call.1} parent=5 // pred_fallthru
        _
      %p284 = scmp.le.s32.totalorder 2, %s16
      // Predicated region
      $region45: #{tpu_custom_call.1} parent=5 // pred_check
        %p285 = pneg %p284
      $region46: #{tpu_custom_call.1} parent=5 // pred_check_branch
        %287 = sbr.rel (%p285) target = $region48
      $region47: #{tpu_custom_call.1} parent=5 // pred_region
        %s288 = ssub.s32 %s16, 2
        // Predicated region
        $region49: #{tpu_custom_call.1} parent=47 // pred_check
          %p289 = pneg %p129
        $region50: #{tpu_custom_call.1} parent=47 // pred_check_branch
          %291 = sbr.rel (%p289) target = $region52
        $region51: #{tpu_custom_call.1} parent=47 // pred_region
          %s292 = sand.u32 %s114, 1
          %s293 = scalar_lea.sflag [#allocation4], %s292
          %s294 = sand.u32 %s114, 1
          %s295 = smul.addr %s294, 4
          %s296 = scalar_lea.vmem [#allocation7], %s295
          %298 = dma.done %s293, 64
        $region52: #{tpu_custom_call.1} parent=47 // pred_fallthru
          _
      $region48: #{tpu_custom_call.1} parent=5 // pred_fallthru
        _
    $region6: #{tpu_custom_call.1} parent=1 // loop_footer
      %s20 = sadd.s32 1, %s16
    $region7: #{tpu_custom_call.1} parent=1 // loop_footer_branch
      %15 = sbr.rel target = $region3
    $region8: #{tpu_custom_call.1} parent=1 // loop_exit
      _
    %299 = vsyncpa [#allocation3], 1
    %s300 = scalar_lea.sflag [#allocation3], 1
    %301 = vsyncpa %s300, 1
    %302 = vsyncpa [#allocation6], 1
    %303 = vsyncpa [#allocation4], 1
    %s304 = scalar_lea.sflag [#allocation4], 1
    %305 = vsyncpa %s304, 1

</llo_original>
